<compile_context>
chip_gen: v7x
topology: tpu7x:2x2x1
jax: 0.10.0
libtpu: 0.0.40
codegen_flags: <defaults>
</compile_context>

<pallas_src>
import functools
import numpy as np
import jax
import jax.numpy as jnp
from jax.experimental import pallas as pl
from jax.experimental.pallas import tpu as pltpu


# ----------------------------- helpers --------------------------------------

def _round_up(x, m):
    return ((x + m - 1) // m) * m


def _tile_prefs():
    """Generation-aware tile preferences: (tm_prefs, tn_prefs, tk_prefs)."""
    try:
        kind = jax.devices()[0].device_kind.lower()
    except Exception:
        kind = ""
    if ("v5e" in kind) or ("v5 lite" in kind) or ("v5litepod" in kind):
        # v5e: keep tm at 512 but widen N/K so each grid step carries enough MXU work
        # to hide the per-step overhead and acc read-modify-write.
        return (512, 256, 128), (256, 128), (512, 384, 256, 128)
    # v6e / v7x: 256-wide MXU; tm up to 1024 halves weight re-streaming on deep layers.
    # Worst-case live blocks (~7 MB double-buffered) stay well under the 32 MiB scoped
    # default and v7x's 64 MiB physical VMEM.
    return (1024, 512, 256, 128), (512, 256, 128), (512, 384, 256, 128)


_TM_PREFS, _TN_PREFS, _TK_PREFS = _tile_prefs()


def _choose_tile(dim, prefs, align):
    """Return (tile, padded_dim).

    Prefer the largest preferred tile that divides the align-rounded dim exactly
    (no padding copy of the operand), then accept <=25% padding waste to keep a
    big MXU-filling tile, else use the whole (align-rounded) dim as one block."""
    dmin = _round_up(dim, align)
    for p in prefs:
        if dmin % p == 0:
            return p, dmin
    for p in prefs:
        dp = _round_up(dim, p)
        if dp - dmin <= dmin // 4:
            return p, dp
    return dmin, dmin


def _rows_tile(rows):
    """Pick (tile_rows, num_blocks, padded_rows) for a (rows, 128) streaming reduce."""
    if rows <= 2048:
        return rows, 1, rows           # full extent: always a legal block
    for tr in (2048, 1024, 512, 256, 128, 64, 32, 16, 8):
        if rows % tr == 0:
            return tr, rows // tr, rows
    rows_p = _round_up(rows, 256)      # rare fallback (needs a pad copy)
    return 256, rows_p // 256, rows_p


# ----------------------------- Pallas kernels ------------------------------

def _matmul_kernel(a_ref, b_ref, bias_ref, o_ref, acc_ref, *, relu):
    k = pl.program_id(2)

    @pl.when(k == 0)
    def _():
        acc_ref[...] = jnp.zeros_like(acc_ref)

    # bf16 x bf16 -> f32 accumulate on the MXU.
    acc_ref[...] += jnp.dot(a_ref[...], b_ref[...], preferred_element_type=jnp.float32)

    @pl.when(k == pl.num_programs(2) - 1)
    def _():
        out = acc_ref[...] + bias_ref[...]
        if relu:
            out = jnp.maximum(out, 0.0)
        o_ref[...] = out.astype(o_ref.dtype)


def pallas_matmul(a, b, bias=None, relu=False, out_dtype=jnp.float32):
    """(M,K) @ (K,N) + bias, optional ReLU. bf16 MXU inputs, f32 accumulation.

    Padding / slicing only happens when the operands are not already aligned, so
    callers that pre-pad (the conv path) never pay an extra HBM copy here."""
    M, K = a.shape
    K2, N = b.shape
    assert K == K2
    if bias is None:
        bias = jnp.zeros((N,), jnp.float32)

    a = a if a.dtype == jnp.bfloat16 else a.astype(jnp.bfloat16)
    b = b if b.dtype == jnp.bfloat16 else b.astype(jnp.bfloat16)

    tm, Mp = _choose_tile(M, _TM_PREFS, 8)
    tk, Kp = _choose_tile(K, _TK_PREFS, 128)
    tn, Np = _choose_tile(N, _TN_PREFS, 128)

    if Mp != M or Kp != K:
        a = jnp.pad(a, ((0, Mp - M), (0, Kp - K)))
    if Kp != K or Np != N:
        b = jnp.pad(b, ((0, Kp - K), (0, Np - N)))
    bias_p = bias.astype(jnp.float32)
    if Np != N:
        bias_p = jnp.pad(bias_p, (0, Np - N))
    bias_p = bias_p.reshape(1, Np)

    out = pl.pallas_call(
        functools.partial(_matmul_kernel, relu=relu),
        out_shape=jax.ShapeDtypeStruct((Mp, Np), out_dtype),
        grid_spec=pltpu.PrefetchScalarGridSpec(
            num_scalar_prefetch=0,
            grid=(Mp // tm, Np // tn, Kp // tk),
            in_specs=[
                pl.BlockSpec((tm, tk), lambda i, j, k: (i, k)),
                pl.BlockSpec((tk, tn), lambda i, j, k: (k, j)),
                pl.BlockSpec((1, tn), lambda i, j, k: (0, j)),
            ],
            out_specs=pl.BlockSpec((tm, tn), lambda i, j, k: (i, j)),
            scratch_shapes=[pltpu.VMEM((tm, tn), jnp.float32)],
        ),
        compiler_params=pltpu.CompilerParams(
            dimension_semantics=("parallel", "parallel", "arbitrary")),
    )(a, b, bias_p)
    if Mp != M or Np != N:
        out = out[:M, :N]
    return out


def _abs_acc_kernel(x_ref, y_ref, o_ref):
    @pl.when(pl.program_id(0) == 0)
    def _():
        o_ref[...] = jnp.zeros_like(o_ref)
    d = jnp.abs(x_ref[...].astype(jnp.float32) - y_ref[...].astype(jnp.float32))
    o_ref[...] += jnp.sum(d, axis=0, keepdims=True)


def pallas_abs_mean(x, y, n_real=None):
    """mean(|x - y|): streamed (TR,128) tiles into a VMEM-resident (1,128) accumulator.
    If the operands are channel/row zero-padded, pass the real element count in n_real
    (padded entries contribute |0-0|=0)."""
    n = int(np.prod(x.shape))
    if n_real is None:
        n_real = n
    xf = x.reshape(-1)
    yf = y.reshape(-1)
    if n % 128 != 0:
        pad = _round_up(n, 128) - n
        xf = jnp.pad(xf, (0, pad))
        yf = jnp.pad(yf, (0, pad))
    rows = xf.shape[0] // 128
    x2 = xf.reshape(rows, 128)
    y2 = yf.reshape(rows, 128)
    TR, P, rows_p = _rows_tile(rows)
    if rows_p != rows:
        x2 = jnp.pad(x2, ((0, rows_p - rows), (0, 0)))
        y2 = jnp.pad(y2, ((0, rows_p - rows), (0, 0)))
    sums = pl.pallas_call(
        _abs_acc_kernel,
        out_shape=jax.ShapeDtypeStruct((1, 128), jnp.float32),
        grid_spec=pltpu.PrefetchScalarGridSpec(
            num_scalar_prefetch=0,
            grid=(P,),
            in_specs=[pl.BlockSpec((TR, 128), lambda p: (p, 0)),
                      pl.BlockSpec((TR, 128), lambda p: (p, 0))],
            out_specs=pl.BlockSpec((1, 128), lambda p: (0, 0)),
        ),
        compiler_params=pltpu.CompilerParams(dimension_semantics=("arbitrary",)),
    )(x2, y2)
    return jnp.sum(sums) / n_real


def _abs_pair_kernel(x_ref, y_ref, o_ref):
    @pl.when(pl.program_id(1) == 0)
    def _():
        o_ref[...] = jnp.zeros_like(o_ref)
    d = jnp.abs(x_ref[0].astype(jnp.float32) - y_ref[0].astype(jnp.float32))
    o_ref[...] += jnp.sum(d, axis=0, keepdims=True)[None]


def pallas_abs_mean_pairs(feat, c_real):
    """feat: (4B, H, W, Cp) bf16 with batch order [x1, y1, x2, y2]; channels >= c_real
    are zero padded.  Returns (mean|x1-y1|, mean|x2-y2|) over the REAL elements —
    both perceptual terms for one VGG feature from a single pallas_call, reading the
    pairs straight out of the batched feature map (no copies)."""
    fourB, H, W, Cp = feat.shape
    B = fourB // 4
    per = B * H * W * Cp
    assert per % 128 == 0
    rowsq = per // 128
    f3 = feat.reshape(4, rowsq, 128)
    TR, P, rows_p = _rows_tile(rowsq)
    if rows_p != rowsq:
        f3 = jnp.pad(f3, ((0, 0), (0, rows_p - rowsq), (0, 0)))
    sums = pl.pallas_call(
        _abs_pair_kernel,
        out_shape=jax.ShapeDtypeStruct((2, 1, 128), jnp.float32),
        grid_spec=pltpu.PrefetchScalarGridSpec(
            num_scalar_prefetch=0,
            grid=(2, P),
            in_specs=[pl.BlockSpec((1, TR, 128), lambda p, r: (2 * p, r, 0)),
                      pl.BlockSpec((1, TR, 128), lambda p, r: (2 * p + 1, r, 0))],
            out_specs=pl.BlockSpec((1, 1, 128), lambda p, r: (p, 0, 0)),
        ),
        compiler_params=pltpu.CompilerParams(
            dimension_semantics=("parallel", "arbitrary")),
    )(f3, f3)
    n_real = B * H * W * c_real
    s = jnp.sum(sums, axis=(1, 2))
    return s[0] / n_real, s[1] / n_real


def _make_blur_kernel(g1d, ks, H, W, PB):
    g = [float(v) for v in g1d]

    def kernel(x_ref, o_ref):
        # Separable gaussian, PB planes per grid step (amortizes per-step overhead).
        # TODO(synk): pltpu.roll-based taps + fused stride subsample.
        for p in range(PB):
            x = x_ref[p]                               # (Hp, Wp)
            tmp = g[0] * x[0:H, :]
            for i in range(1, ks):
                tmp = tmp + g[i] * x[i:i + H, :]
            out = g[0] * tmp[:, 0:W]
            for j in range(1, ks):
                out = out + g[j] * tmp[:, j:j + W]
            o_ref[p] = out

    return kernel


def _pick_pb(n_planes, plane_bytes):
    """Largest planes-per-block dividing n_planes, keeping >=2 grid steps (v7x megacore)
    and <=4MB input blocks."""
    best = 1
    for pb in range(1, n_planes + 1):
        if n_planes % pb:
            continue
        if pb * plane_bytes > (4 << 20):
            break
        if (n_planes // pb) >= 2 or n_planes == 1:
            best = pb
    return best


def anti_alias_downsample(x_nchw, scale):
    """AntiAliasInterpolation2d: depthwise separable gaussian blur (Pallas) + subsample."""
    if scale == 1:
        return x_nchw
    sigma = (1.0 / scale - 1.0) / 2.0
    ks = 2 * round(sigma * 4) + 1
    ka = ks // 2
    kb = ka - 1 if ks % 2 == 0 else ka
    mean = (ks - 1) / 2.0
    g = np.exp(-((np.arange(ks) - mean) ** 2) / (2.0 * sigma ** 2))
    g = g / g.sum()     # 1D kernel; outer(g,g) equals the normalized 2D gaussian

    B, C, H, W = x_nchw.shape
    n_planes = B * C
    Hp, Wp = H + ka + kb, W + ka + kb
    xp = jnp.pad(x_nchw.reshape(n_planes, H, W).astype(jnp.float32),
                 ((0, 0), (ka, kb), (ka, kb)))
    PB = _pick_pb(n_planes, Hp * Wp * 4)
    blurred = pl.pallas_call(
        _make_blur_kernel(g, ks, H, W, PB),
        out_shape=jax.ShapeDtypeStruct((n_planes, H, W), jnp.float32),
        grid_spec=pltpu.PrefetchScalarGridSpec(
            num_scalar_prefetch=0,
            grid=(n_planes // PB,),
            in_specs=[pl.BlockSpec((PB, Hp, Wp), lambda p: (p, 0, 0))],
            out_specs=pl.BlockSpec((PB, H, W), lambda p: (p, 0, 0)),
        ),
        compiler_params=pltpu.CompilerParams(dimension_semantics=("parallel",)),
    )(xp)
    # TODO(synk): subsampling could be fused into the kernel; done in XLA for robustness.
    stride = int(round(1.0 / scale))
    out = blurred[:, ::stride, ::stride]
    return out.reshape(B, C, H // stride, W // stride)


# ----------------------------- Conv / layout glue ---------------------------

def to_nhwc(x):
    return jnp.transpose(x, (0, 2, 3, 1))


def to_nchw(x):
    return jnp.transpose(x, (0, 3, 1, 2))


def conv3x3_same(x_nhwc, w, b, relu=True, out_dtype=jnp.float32, pad_cout=False):
    """3x3, pad=1 conv as bf16 im2col + Pallas MXU matmul.

    x_nhwc may carry zero-padded extra channels (Cp >= w's Cin); the weight is
    zero-padded to match so the result is identical.  The im2col column matrix is
    built already K-padded (zero tail folded into the concatenate), and with
    pad_cout=True the output channels are zero-padded to a multiple of 128 so the
    matmul writes a lane-dense output with no slice copy."""
    B, H, W, Cp = x_nhwc.shape
    _, _, cin_w, cout = w.shape
    if cin_w < Cp:
        w = jnp.pad(w, ((0, 0), (0, 0), (0, Cp - cin_w), (0, 0)))
    x_bf = x_nhwc if x_nhwc.dtype == jnp.bfloat16 else x_nhwc.astype(jnp.bfloat16)
    xp = jnp.pad(x_bf, ((0, 0), (1, 1), (1, 1), (0, 0)))
    K = 9 * Cp
    Kpad = _round_up(K, 128)
    # TODO(synk): fold the 9 taps into the matmul K-grid to avoid materializing 9xC.
    patches = [xp[:, i:i + H, j:j + W, :] for i in range(3) for j in range(3)]
    if Kpad > K:
        patches.append(jnp.zeros((B, H, W, Kpad - K), jnp.bfloat16))
    col = jnp.concatenate(patches, axis=-1).reshape(B * H * W, Kpad)

    w2 = w.reshape(K, cout)
    if Kpad > K:
        w2 = jnp.pad(w2, ((0, Kpad - K), (0, 0)))
    Nout = _round_up(cout, 128) if pad_cout else cout
    bias = b
    if Nout > cout:
        w2 = jnp.pad(w2, ((0, 0), (0, Nout - cout)))
        bias = jnp.pad(b, (0, Nout - cout))
    out = pallas_matmul(col, w2, bias, relu=relu, out_dtype=out_dtype)
    return out.reshape(B, H, W, Nout)


def maxpool2(x_nhwc):
    B, H, W, C = x_nhwc.shape
    return x_nhwc.reshape(B, H // 2, 2, W // 2, 2, C).max(axis=(2, 4))


def avgpool2(x_nhwc):
    B, H, W, C = x_nhwc.shape
    return x_nhwc.reshape(B, H // 2, 2, W // 2, 2, C).mean(axis=(2, 4))


def upsample2(x_nhwc):
    return jnp.repeat(jnp.repeat(x_nhwc, 2, axis=1), 2, axis=2)


def _conv_init(key, cin, cout):
    w = jax.random.normal(key, (3, 3, cin, cout), jnp.float32) * np.sqrt(2.0 / (9 * cin))
    b = jnp.zeros((cout,), jnp.float32)
    return (w, b)


# --------------------------------- Vgg19 ------------------------------------

_VGG_LAYOUT = [
    ('conv', 3, 64), ('out',),
    ('conv', 64, 64), ('pool',), ('conv', 64, 128), ('out',),
    ('conv', 128, 128), ('pool',), ('conv', 128, 256), ('out',),
    ('conv', 256, 256), ('conv', 256, 256), ('conv', 256, 256), ('pool',),
    ('conv', 256, 512), ('out',),
    ('conv', 512, 512), ('conv', 512, 512), ('conv', 512, 512), ('pool',),
    ('conv', 512, 512), ('out',),
]

_VGG_MEAN = np.array([0.485, 0.456, 0.406], np.float32).reshape(1, 3, 1, 1)
_VGG_STD = np.array([0.229, 0.224, 0.225], np.float32).reshape(1, 3, 1, 1)


def init_vgg19(key):
    # TODO(synk): torchvision pretrained VGG19 weights cannot be loaded here; the layer
    # shapes match VGG19.features[0:30] but weights are deterministic He init.
    params = []
    for item in _VGG_LAYOUT:
        if item[0] == 'conv':
            key, sub = jax.random.split(key)
            params.append(_conv_init(sub, item[1], item[2]))
    return params


def vgg19_forward(x_nchw, vgg_params):
    """Features are computed/stored as bf16, channel-padded to multiples of 128
    (padded channels stay exactly zero).  Returns [(feat_nhwc, real_channels), ...]."""
    x = (x_nchw - _VGG_MEAN) / _VGG_STD
    h = to_nhwc(x)
    feats = []
    ci = 0
    c_real = 3
    for item in _VGG_LAYOUT:
        if item[0] == 'conv':
            w, b = vgg_params[ci]
            ci += 1
            h = conv3x3_same(h, w, b, relu=True, out_dtype=jnp.bfloat16, pad_cout=True)
            c_real = item[2]
        elif item[0] == 'pool':
            h = maxpool2(h)
        else:
            feats.append((h, c_real))
    return feats  # [h_relu1 .. h_relu5]


# ------------------------- synthetic sub-networks ---------------------------

NUM_KP = 10


def init_kp_extractor(key):
    # TODO(synk): real kp_extractor architecture is not in the provided source;
    # deterministic pool+linear stand-in returning {'fg_kp': (B, num_kp, 2)}.
    w = jax.random.normal(key, (3 * 8 * 8, NUM_KP * 2), jnp.float32) * 0.05
    b = jnp.zeros((NUM_KP * 2,), jnp.float32)
    return (w, b)


def kp_extractor_forward(img_nchw, kp_params):
    B, C, H, W = img_nchw.shape
    pooled = img_nchw.reshape(B, C, 8, H // 8, 8, W // 8).mean(axis=(3, 5))
    feat = pooled.reshape(B, C * 8 * 8)
    w, b = kp_params
    fg = jnp.tanh(pallas_matmul(feat, w, b, relu=False))
    return {'fg_kp': fg.reshape(B, NUM_KP, 2)}


def dense_motion_forward(source_image, kp_driving, kp_source, bg_param,
                         dropout_flag, dropout_p):
    # TODO(synk): real TPS dense-motion network not in provided source; deterministic
    # stand-in producing an identity deformation grid + multi-scale occlusion maps.
    B, C, H, W = source_image.shape
    kp_energy = jnp.sum((kp_driving['fg_kp'] - kp_source['fg_kp']) ** 2, axis=(1, 2))
    base = jnp.mean(source_image, axis=1, keepdims=True)
    occ1 = jax.nn.sigmoid(2.0 * base - 1.0 + kp_energy[:, None, None, None])
    occ2 = occ1.reshape(B, 1, H // 2, 2, W // 2, 2).mean(axis=(3, 5))
    ys = jnp.linspace(-1.0, 1.0, H)
    xs = jnp.linspace(-1.0, 1.0, W)
    grid = jnp.stack(jnp.meshgrid(xs, ys, indexing='xy'), axis=-1)
    deformation = jnp.broadcast_to(grid[None], (B, H, W, 2))
    return {'occlusion_map': [occ1, occ2], 'deformation': deformation}


def init_inpainting(key):
    # TODO(synk): real inpainting network not in provided source; tiny conv encoder/decoder
    # stand-in exposing prediction / occlusion_map / warped_encoder_maps / encoder_maps.
    k1, k2, k3 = jax.random.split(key, 3)
    return {'enc1': _conv_init(k1, 3, 8),
            'enc2': _conv_init(k2, 8, 16),
            'dec': _conv_init(k3, 24, 3),
            'num_channels': 3}


def _inpainting_encode(img_nchw, P):
    h = to_nhwc(img_nchw)
    f1 = conv3x3_same(h, *P['enc1'], relu=True)              # (B,H,W,8)
    f2 = conv3x3_same(avgpool2(f1), *P['enc2'], relu=True)   # (B,H/2,W/2,16)
    return f1, f2


def inpainting_forward(img_nchw, dense_motion, P):
    f1, f2 = _inpainting_encode(img_nchw, P)
    occ = dense_motion['occlusion_map']
    occ1, occ2 = to_nhwc(occ[0]), to_nhwc(occ[1])
    # TODO(synk): encoder maps should be warped by grid_sample(deformation); the stand-in
    # dense motion is the identity grid so the warp reduces to the occlusion multiply.
    wf1 = f1 * occ1
    wf2 = f2 * occ2
    dec_in = jnp.concatenate([wf1, upsample2(wf2)], axis=-1)
    pred = jax.nn.sigmoid(conv3x3_same(dec_in, *P['dec'], relu=False))
    return {'prediction': to_nchw(pred),                 # NCHW for pyramid / VGG / motion
            'occlusion_map': occ,
            # decoder order (deepest first), matching decode_map[-i-1] indexing; kept NHWC.
            'warped_encoder_maps': [wf2, wf1],
            # raw (unwarped) encoder features, reused for the warp loss (no recompute).
            'encoder_maps': [f1, f2]}


# --------------------------- GeneratorFullModel -----------------------------

def generator_full_model_forward(x, epoch, params, train_params):
    loss_weights = train_params['loss_weights']
    scales = train_params['scales']

    kp_source = kp_extractor_forward(x['source'], params['kp'])
    kp_driving = kp_extractor_forward(x['driving'], params['kp'])
    kp_middle1 = {'fg_kp': 0.5 * kp_source['fg_kp'] + 0.5 * kp_driving['fg_kp']}

    bg_param = None
    bg_param2 = None
    if epoch >= train_params['dropout_epoch']:
        dropout_flag = False
        dropout_p = 0.0
    else:
        dropout_flag = True
        dropout_p = min(epoch / train_params['dropout_inc_epoch'] * train_params['dropout_maxp']
                        + train_params['dropout_startp'], train_params['dropout_maxp'])

    dense_motion = dense_motion_forward(x['source'], kp_middle1, kp_source, None,
                                        dropout_flag, dropout_p)
    generated = inpainting_forward(x['source'], dense_motion, params['inpaint'])
    generated.update({'kp_source': kp_source, 'kp_middle1': kp_middle1,
                      'kp_driving': kp_driving})
    mid_img_stod = generated['prediction']

    # TODO(synk): bg_predictor not in provided source; configured off (bg_predictor=None).
    dense_motion2 = dense_motion_forward(mid_img_stod, kp_driving, kp_middle1, bg_param,
                                         dropout_flag, dropout_p)
    generated2 = inpainting_forward(mid_img_stod, dense_motion2, params['inpaint'])

    dense_motion3 = dense_motion_forward(x['driving'], kp_middle1, kp_driving, None,
                                         dropout_flag, dropout_p)
    generated3 = inpainting_forward(x['driving'], dense_motion3, params['inpaint'])
    mid_img_dtos = generated3['prediction']

    dense_motion4 = dense_motion_forward(mid_img_dtos, kp_source, kp_middle1, bg_param2,
                                         dropout_flag, dropout_p)
    generated4 = inpainting_forward(mid_img_dtos, dense_motion4, params['inpaint'])

    loss_values = {}

    if sum(loss_weights['perceptual']) != 0:
        # One blur + one VGG forward per scale over all four images (gen2, driving,
        # gen4, source) concatenated on batch; both perceptual terms per feature come
        # out of a single paired abs-mean kernel.  y-features are the real images'
        # (stop-gradient in the reference; forward value identical).
        batch_img = jnp.concatenate(
            [generated2['prediction'], x['driving'],
             generated4['prediction'], x['source']], axis=0)
        B = x['source'].shape[0]
        total1 = 0.0
        total2 = 0.0
        for scale in scales:
            img = anti_alias_downsample(batch_img, scale)
            feats = vgg19_forward(img, params['vgg'])
            for i, weight in enumerate(loss_weights['perceptual']):
                f, c_real = feats[i]
                m1, m2 = pallas_abs_mean_pairs(f, c_real)
                total1 += weight * m1
                total2 += weight * m2
        loss_values['perceptual'] = total1
        loss_values['perceptual2'] = total2

    # TODO(synk): structure/apperance losses require a pretrained DINO VitExtractor and
    # torchvision Resize/Normalize transforms; no Pallas equivalent — reported as 0.
    loss_values['structure'] = jnp.float32(0.0) * 10
    loss_values['apperance'] = jnp.float32(0.0) * 10

    # TODO(synk): equivariance loss requires TPS + F.grid_sample(reflection padding);
    # disabled in this configuration via loss_weights['equivariance_value'] = 0.
    if loss_weights['equivariance_value'] != 0:
        pass

    if loss_weights['warp_loss'] != 0:
        occlusion_map = generated2['occlusion_map']
        # Reuse the driving-image encoder features already computed for generated3
        # (deterministic encoder => identical to re-running get_encode on x['driving']).
        f1d, f2d = generated3['encoder_maps']
        encode_map = [f1d * to_nhwc(occlusion_map[0]),
                      f2d * to_nhwc(occlusion_map[1])]
        decode_map = generated2['warped_encoder_maps']
        value = 0.0
        for i in range(len(encode_map)):
            value += pallas_abs_mean(encode_map[i], decode_map[-i - 1])
        loss_values['warp_loss'] = loss_weights['warp_loss'] * value

    if loss_weights['warp_loss'] != 0:
        decode_map1 = generated['warped_encoder_maps']
        decode_map2 = generated3['warped_encoder_maps']
        value = 0.0
        for i in range(len(decode_map1)):
            value += pallas_abs_mean(decode_map1[i], decode_map2[i])
        loss_values['con_loss'] = loss_weights['warp_loss'] * value

    # bg loss skipped: bg_predictor is None in this configuration.
    return loss_values, generated, generated2


# ---------------------------------- main -------------------------------------

if __name__ == "__main__":
    train_params = {
        'scales': [0.5],
        'loss_weights': {'perceptual': [10, 10, 10, 10, 10],
                         'equivariance_value': 0,
                         'warp_loss': 10,
                         'bg': 0},
        'dropout_epoch': 10, 'dropout_maxp': 0.7,
        'dropout_inc_epoch': 10, 'dropout_startp': 0.0,
        'bg_start': 1000, 'transform_params': {},
    }

    data_key = jax.random.PRNGKey(0)
    k_src, k_drv = jax.random.split(data_key)
    B, C, H, W = 2, 3, 32, 32
    x = {'source': jax.random.uniform(k_src, (B, C, H, W), jnp.float32),
         'driving': jax.random.uniform(k_drv, (B, C, H, W), jnp.float32)}

    pkey = jax.random.PRNGKey(42)
    k_vgg, k_kp, k_inp = jax.random.split(pkey, 3)
    params = {'vgg': init_vgg19(k_vgg),
              'kp': init_kp_extractor(k_kp),
              'inpaint': init_inpainting(k_inp)}

    loss_values, generated, generated2 = generator_full_model_forward(
        x, epoch=5, params=params, train_params=train_params)

    jax.block_until_ready((loss_values,
                           generated['prediction'],
                           generated2['prediction']))
    print("KERNEL_OK")
</pallas_src>

<mosaic_0001>
module attributes {stable_mosaic.version = 11 : i64} {
  func.func @_matmul_kernel(%arg0: i32, %arg1: i32, %arg2: i32, %arg3: memref<8x256xbf16, #tpu.memory_space<vmem>>, %arg4: memref<256x128xbf16, #tpu.memory_space<vmem>>, %arg5: memref<1x128xf32, #tpu.memory_space<vmem>>, %arg6: memref<8x128xf32, #tpu.memory_space<vmem>>, %arg7: memref<8x128xf32, #tpu.memory_space<vmem>>) attributes {dimension_semantics = [#tpu.dimension_semantics<parallel>, #tpu.dimension_semantics<parallel>, #tpu.dimension_semantics<arbitrary>], iteration_bounds = array<i64: 1, 1, 1>, scalar_prefetch = 0 : i64, scratch_operands = 1 : i64, tpu.core_type = #tpu.core_type<tc>, window_params = [{transform_indices = @transform_0, window_bounds = array<i64: 8, 256>}, {transform_indices = @transform_1, window_bounds = array<i64: 256, 128>}, {transform_indices = @transform_2, window_bounds = array<i64: 1, 128>}, {transform_indices = @transform_3, window_bounds = array<i64: 8, 128>}]} {
    %c0_i32 = arith.constant 0 : i32
    %0 = arith.cmpi eq, %arg2, %c0_i32 : i32
    %1 = arith.extui %0 : i1 to i32
    %c0_i32_0 = arith.constant 0 : i32
    %2 = arith.cmpi ne, %1, %c0_i32_0 : i32
    scf.if %2 {
      %cst_10 = arith.constant 0.000000e+00 : f32
      %12 = vector.broadcast %cst_10 : f32 to vector<8x128xf32>
      %c0_11 = arith.constant 0 : index
      %c0_12 = arith.constant 0 : index
      %13 = vector.load %arg7[%c0_11, %c0_12] : memref<8x128xf32, #tpu.memory_space<vmem>>, vector<8x128xf32>
      tpu.vector_store %arg7[%c0_11, %c0_12], %12 {strides = array<i32>} : memref<8x128xf32, #tpu.memory_space<vmem>>, vector<8x128xf32>,
    } else {
    }
    %c0 = arith.constant 0 : index
    %c0_1 = arith.constant 0 : index
    %3 = vector.load %arg7[%c0, %c0_1] : memref<8x128xf32, #tpu.memory_space<vmem>>, vector<8x128xf32>
    %c0_2 = arith.constant 0 : index
    %c0_3 = arith.constant 0 : index
    %4 = vector.load %arg3[%c0_2, %c0_3] : memref<8x256xbf16, #tpu.memory_space<vmem>>, vector<8x256xbf16>
    %c0_4 = arith.constant 0 : index
    %c0_5 = arith.constant 0 : index
    %5 = vector.load %arg4[%c0_4, %c0_5] : memref<256x128xbf16, #tpu.memory_space<vmem>>, vector<256x128xbf16>
    %cst = arith.constant dense<0.000000e+00> : vector<8x128xf32>
    %6 = tpu.matmul %4, %5, %cst {dimension_numbers = #tpu.dot_dimension_numbers<[1], [0], [0], [1], [0, 0, 1, 1], [], []>} : vector<8x256xbf16>, vector<256x128xbf16>, vector<8x128xf32> -> vector<8x128xf32>
    %7 = arith.addf %3, %6 : vector<8x128xf32>
    %c0_6 = arith.constant 0 : index
    %c0_7 = arith.constant 0 : index
    %8 = vector.load %arg7[%c0_6, %c0_7] : memref<8x128xf32, #tpu.memory_space<vmem>>, vector<8x128xf32>
    tpu.vector_store %arg7[%c0_6, %c0_7], %7 {strides = array<i32>} : memref<8x128xf32, #tpu.memory_space<vmem>>, vector<8x128xf32>,
    %c0_i32_8 = arith.constant 0 : i32
    %9 = arith.cmpi eq, %arg2, %c0_i32_8 : i32
    %10 = arith.extui %9 : i1 to i32
    %c0_i32_9 = arith.constant 0 : i32
    %11 = arith.cmpi ne, %10, %c0_i32_9 : i32
    scf.if %11 {
      %c0_10 = arith.constant 0 : index
      %c0_11 = arith.constant 0 : index
      %12 = vector.load %arg7[%c0_10, %c0_11] : memref<8x128xf32, #tpu.memory_space<vmem>>, vector<8x128xf32>
      %c0_12 = arith.constant 0 : index
      %c0_13 = arith.constant 0 : index
      %13 = vector.load %arg5[%c0_12, %c0_13] : memref<1x128xf32, #tpu.memory_space<vmem>>, vector<1x128xf32>
      %14 = vector.broadcast %13 : vector<1x128xf32> to vector<8x128xf32>
      %15 = arith.addf %12, %14 : vector<8x128xf32>
      %c0_14 = arith.constant 0 : index
      %c0_15 = arith.constant 0 : index
      %16 = vector.load %arg6[%c0_14, %c0_15] : memref<8x128xf32, #tpu.memory_space<vmem>>, vector<8x128xf32>
      tpu.vector_store %arg6[%c0_14, %c0_15], %15 {strides = array<i32>} : memref<8x128xf32, #tpu.memory_space<vmem>>, vector<8x128xf32>,
    } else {
    }
    return
  }
  func.func @transform_0(%arg0: i32, %arg1: i32, %arg2: i32) -> (i32, i32) {
    %c0_i32 = arith.constant 0 : i32
    return %arg0, %arg2 : i32, i32
  }
  func.func @transform_1(%arg0: i32, %arg1: i32, %arg2: i32) -> (i32, i32) {
    %c0_i32 = arith.constant 0 : i32
    return %arg2, %arg1 : i32, i32
  }
  func.func @transform_2(%arg0: i32, %arg1: i32, %arg2: i32) -> (i32, i32) {
    %c0_i32 = arith.constant 0 : i32
    %c0_i32_0 = arith.constant 0 : i32
    return %c0_i32, %arg1 : i32, i32
  }
  func.func @transform_3(%arg0: i32, %arg1: i32, %arg2: i32) -> (i32, i32) {
    %c0_i32 = arith.constant 0 : i32
    return %arg0, %arg1 : i32, i32
  }
}

</mosaic_0001>

<llo_original>
// kernel: tpu_custom_call.1
$region0: #{tpu_custom_call.1}
  #allocation0 [shape = 'u32[]', space=smem, size = 0x4, offset = 0x4, fixed_abs, tag = 'smem constant byte address 0x4 - core index']
  #allocation1 [shape = 'u32[144,128]{1,0:T(1,128)}', space=vmem, size = 0x12000, scoped, tag = 'internal scratch']
  #allocation2 [shape = 'f32[8,128]{1,0:T(8,128)}', space=vmem, size = 0x1000, scoped, tag = 'scratch operand']
  %s0 = inlined_call_operand.hbm [shape: bf16[8,256], index: 0, kind: input, shape index: {}]
  %s1 = inlined_call_operand.hbm [shape: bf16[256,128], index: 1, kind: input, shape index: {}]
  %s2 = inlined_call_operand.vmem [shape: f32[1,128], index: 2, kind: input, shape index: {}]
  %s3 = inlined_call_operand.hbm [shape: f32[8,128], index: 3, kind: output, shape index: {}]
  %s4 = sld [smem:[#allocation0]]
  $region38: #{tpu_custom_call.1} parent=0
    _
  %s6 = ssub.s32 1, %s4
  %s7 = scalar_select 0, %s6, %s4
  $region1: #{tpu_custom_call.1} parent=0
    #allocation3 [shape = 'u8[4096]{0}', space=vmem, size = 0x1000, scoped, tag = 'input window, operand 0, single buffered']
    #allocation4 [shape = 's32[1]{0}', space=sflag, size = 0x4, scoped, tag = 'scoped memory for tpu_custom_call.1']
    #allocation5 [shape = 's32[1]{0}', space=sflag, size = 0x4, scoped, tag = 'scoped memory for tpu_custom_call.1']
    #allocation6 [shape = 'u8[65536]{0}', space=vmem, size = 0x10000, scoped, tag = 'input window, operand 1, single buffered']
    #allocation7 [shape = 's32[1]{0}', space=sflag, size = 0x4, scoped, tag = 'scoped memory for tpu_custom_call.1']
    #allocation8 [shape = 'u8[4096]{0}', space=vmem, size = 0x1000, scoped, tag = 'output window, operand 0, single buffered']
    %8 = vsyncpa [#allocation4], 0
    %9 = vsyncpa [#allocation7], 0
    %10 = vsyncpa [#allocation5], 0
    // Predicated region
    $region2: #{tpu_custom_call.1} parent=1 // pred_check
      _
    $region3: #{tpu_custom_call.1} parent=1 // pred_check_branch
      %12 = sbr.rel (0) target = $region5
    $region4: #{tpu_custom_call.1} parent=1 // pred_region
      %s14 = ssub.s32 128, 128
      %15 = vsyncadd [#allocation4], %s14
      %s17 = sshll.u32 [#allocation3], 4
      %s18 = int_to_ptr.vmem [resolvable:$true] %s17
      %20 = dma.hbm_to_vmem [thread:$0]  %s0, 128, %s18, [#allocation4]
    $region5: #{tpu_custom_call.1} parent=1 // pred_fallthru
      _
    // Predicated region
    $region6: #{tpu_custom_call.1} parent=1 // pred_check
      _
    $region7: #{tpu_custom_call.1} parent=1 // pred_check_branch
      %22 = sbr.rel (0) target = $region9
    $region8: #{tpu_custom_call.1} parent=1 // pred_region
      %s24 = ssub.s32 2048, 2048
      %25 = vsyncadd [#allocation7], %s24
      %s26 = sshll.u32 [#allocation6], 4
      %s27 = int_to_ptr.vmem [resolvable:$true] %s26
      %32 = dma.hbm_to_vmem [thread:$0]  %s1, 2048, %s27, [#allocation7], 64, 64, 4
    $region9: #{tpu_custom_call.1} parent=1 // pred_fallthru
      _
    // Predicated region
    $region10: #{tpu_custom_call.1} parent=1 // pred_check
      _
    $region11: #{tpu_custom_call.1} parent=1 // pred_check_branch
      %34 = sbr.rel (0) target = $region13
    $region12: #{tpu_custom_call.1} parent=1 // pred_region
      _
    $region13: #{tpu_custom_call.1} parent=1 // pred_fallthru
      _
    // Predicated region
    $region14: #{tpu_custom_call.1} parent=1 // pred_check
      _
    $region15: #{tpu_custom_call.1} parent=1 // pred_check_branch
      %36 = sbr.rel (0) target = $region17
    $region16: #{tpu_custom_call.1} parent=1 // pred_region
      %37 = dma.done [#allocation4], 128
    $region17: #{tpu_custom_call.1} parent=1 // pred_fallthru
      _
    // Predicated region
    $region18: #{tpu_custom_call.1} parent=1 // pred_check
      _
    $region19: #{tpu_custom_call.1} parent=1 // pred_check_branch
      %39 = sbr.rel (0) target = $region21
    $region20: #{tpu_custom_call.1} parent=1 // pred_region
      %40 = dma.done [#allocation7], 2048
    $region21: #{tpu_custom_call.1} parent=1 // pred_fallthru
      _
    %p42 = scmp.eq.s32.totalorder 0, 0
    // Predicated region
    $region22: #{tpu_custom_call.1} parent=1 // pred_check
      %p43 = pneg %p42
    $region23: #{tpu_custom_call.1} parent=1 // pred_check_branch
      %45 = sbr.rel (%p43) target = $region25
    $region24: #{tpu_custom_call.1} parent=1 // pred_region
      %46 = vst [vmem:[#allocation2] sm:$0xff] 0.0
    $region25: #{tpu_custom_call.1} parent=1 // pred_fallthru
      _
    %v47 = vld [vmem:[#allocation2] sm:$0xff]
    %v48 = vld [vmem:[#allocation3] sm:$0xff]
    %v49 = vld [vmem:[#allocation6] sm:$0xf]
    %v50 = vld [vmem:[#allocation6 + $0x4] sm:$0xf]
    %v51 = vld [vmem:[#allocation6 + $0x8] sm:$0xf]
    %v52 = vld [vmem:[#allocation6 + $0xc] sm:$0xf]
    %v53 = vld [vmem:[#allocation6 + $0x10] sm:$0xf]
    %v54 = vld [vmem:[#allocation6 + $0x14] sm:$0xf]
    %v55 = vld [vmem:[#allocation6 + $0x18] sm:$0xf]
    %v56 = vld [vmem:[#allocation6 + $0x1c] sm:$0xf]
    %v57 = vld [vmem:[#allocation6 + $0x20] sm:$0xf]
    %v58 = vld [vmem:[#allocation6 + $0x24] sm:$0xf]
    %v59 = vld [vmem:[#allocation6 + $0x28] sm:$0xf]
    %v60 = vld [vmem:[#allocation6 + $0x2c] sm:$0xf]
    %v61 = vld [vmem:[#allocation6 + $0x30] sm:$0xf]
    %v62 = vld [vmem:[#allocation6 + $0x34] sm:$0xf]
    %v63 = vld [vmem:[#allocation6 + $0x38] sm:$0xf]
    %v64 = vld [vmem:[#allocation6 + $0x3c] sm:$0xf]
    %v65 = vld [vmem:[#allocation6 + $0x40] sm:$0xf]
    %v66 = vld [vmem:[#allocation6 + $0x44] sm:$0xf]
    %v67 = vld [vmem:[#allocation6 + $0x48] sm:$0xf]
    %v68 = vld [vmem:[#allocation6 + $0x4c] sm:$0xf]
    %v69 = vld [vmem:[#allocation6 + $0x50] sm:$0xf]
    %v70 = vld [vmem:[#allocation6 + $0x54] sm:$0xf]
    %v71 = vld [vmem:[#allocation6 + $0x58] sm:$0xf]
    %v72 = vld [vmem:[#allocation6 + $0x5c] sm:$0xf]
    %v73 = vld [vmem:[#allocation6 + $0x60] sm:$0xf]
    %v74 = vld [vmem:[#allocation6 + $0x64] sm:$0xf]
    %v75 = vld [vmem:[#allocation6 + $0x68] sm:$0xf]
    %v76 = vld [vmem:[#allocation6 + $0x6c] sm:$0xf]
    %v77 = vld [vmem:[#allocation6 + $0x70] sm:$0xf]
    %v78 = vld [vmem:[#allocation6 + $0x74] sm:$0xf]
    %v79 = vld [vmem:[#allocation6 + $0x78] sm:$0xf]
    %v80 = vld [vmem:[#allocation6 + $0x7c] sm:$0xf]
    %v82 = vunpack.c.l.b16 %v48
    %v83 = vunpack.c.h.b16 %v48
    %v84 = vpack.c.b16 %v82, %v82
    %v85 = vpack.c.b16 %v83, %v83
    %v120 = vunpack.c.l.b16 %v49
    %v121 = vunpack.c.l.b16 %v50
    %v122 = vunpack.c.l.b16 %v51
    %v123 = vunpack.c.l.b16 %v52
    %v124 = vunpack.c.l.b16 %v53
    %v125 = vunpack.c.l.b16 %v54
    %v126 = vunpack.c.l.b16 %v55
    %v127 = vunpack.c.l.b16 %v56
    %v128 = vunpack.c.l.b16 %v57
    %v129 = vunpack.c.l.b16 %v58
    %v130 = vunpack.c.l.b16 %v59
    %v131 = vunpack.c.l.b16 %v60
    %v132 = vunpack.c.l.b16 %v61
    %v133 = vunpack.c.l.b16 %v62
    %v134 = vunpack.c.l.b16 %v63
    %v135 = vunpack.c.l.b16 %v64
    %v136 = vunpack.c.l.b16 %v65
    %v137 = vunpack.c.l.b16 %v66
    %v138 = vunpack.c.l.b16 %v67
    %v139 = vunpack.c.l.b16 %v68
    %v140 = vunpack.c.l.b16 %v69
    %v141 = vunpack.c.l.b16 %v70
    %v142 = vunpack.c.l.b16 %v71
    %v143 = vunpack.c.l.b16 %v72
    %v144 = vunpack.c.l.b16 %v73
    %v145 = vunpack.c.l.b16 %v74
    %v146 = vunpack.c.l.b16 %v75
    %v147 = vunpack.c.l.b16 %v76
    %v148 = vunpack.c.l.b16 %v77
    %v149 = vunpack.c.l.b16 %v78
    %v150 = vunpack.c.l.b16 %v79
    %v151 = vunpack.c.l.b16 %v80
    %v152 = vpack.c.b16 %v121, %v120
    %v153 = vpack.c.b16 %v123, %v122
    %v154 = vpack.c.b16 %v125, %v124
    %v155 = vpack.c.b16 %v127, %v126
    %v156 = vpack.c.b16 %v129, %v128
    %v157 = vpack.c.b16 %v131, %v130
    %v158 = vpack.c.b16 %v133, %v132
    %v159 = vpack.c.b16 %v135, %v134
    %v160 = vpack.c.b16 %v137, %v136
    %v161 = vpack.c.b16 %v139, %v138
    %v162 = vpack.c.b16 %v141, %v140
    %v163 = vpack.c.b16 %v143, %v142
    %v164 = vpack.c.b16 %v145, %v144
    %v165 = vpack.c.b16 %v147, %v146
    %v166 = vpack.c.b16 %v149, %v148
    %v167 = vpack.c.b16 %v151, %v150
    %184 = vmatprep.subr.bf16.mxu0 0
    %185 = vmatpush1.bf16.msra.mxu0 %v152
    %186 = vmatprep.subr.bf16.mxu0 0
    %187 = vmatpush1.bf16.msra.mxu0 %v153
    %188 = vmatprep.subr.bf16.mxu0 0
    %189 = vmatpush1.bf16.msra.mxu0 %v154
    %190 = vmatprep.subr.bf16.mxu0 0
    %191 = vmatpush1.bf16.msra.mxu0 %v155
    %192 = vmatprep.subr.bf16.mxu0 0
    %193 = vmatpush1.bf16.msra.mxu0 %v156
    %194 = vmatprep.subr.bf16.mxu0 0
    %195 = vmatpush1.bf16.msra.mxu0 %v157
    %196 = vmatprep.subr.bf16.mxu0 0
    %197 = vmatpush1.bf16.msra.mxu0 %v158
    %198 = vmatprep.subr.bf16.mxu0 0
    %199 = vmatpush1.bf16.msra.mxu0 %v159
    %200 = vmatprep.subr.bf16.mxu0 0
    %201 = vmatpush1.bf16.msra.mxu0 %v160
    %202 = vmatprep.subr.bf16.mxu0 0
    %203 = vmatpush1.bf16.msra.mxu0 %v161
    %204 = vmatprep.subr.bf16.mxu0 0
    %205 = vmatpush1.bf16.msra.mxu0 %v162
    %206 = vmatprep.subr.bf16.mxu0 0
    %207 = vmatpush1.bf16.msra.mxu0 %v163
    %208 = vmatprep.subr.bf16.mxu0 0
    %209 = vmatpush1.bf16.msra.mxu0 %v164
    %210 = vmatprep.subr.bf16.mxu0 0
    %211 = vmatpush1.bf16.msra.mxu0 %v165
    %212 = vmatprep.subr.bf16.mxu0 0
    %213 = vmatpush1.bf16.msra.mxu0 %v166
    %214 = vmatprep.subr.bf16.mxu0 0
    %215 = vmatpush1.bf16.msra.mxu0 %v167
    %216 = vmatprep.mubr.bf16.mxu0 %v85
    %217 = vmatmul.mubr.bf16.gmra.mrb[0].mxu0 %v84
    %v218 = vpop.f32.mrb[0].mxu0
    %v219 = vadd.f32 0.0, %v218
    %v220 = vpop.f32.mrb[0].mxu0
    %v221 = vpop.f32.mrb[0].mxu0
    %v222 = vpop.f32.mrb[0].mxu0
    %223 = vdwg.mxu0
    %v224 = vadd.f32 %v47, %v219
    %225 = vst [vmem:[#allocation2] sm:$0xff] %v224
    // Predicated region
    $region26: #{tpu_custom_call.1} parent=1 // pred_check
      %p226 = pneg %p42
    $region27: #{tpu_custom_call.1} parent=1 // pred_check_branch
      %228 = sbr.rel (%p226) target = $region29
    $region28: #{tpu_custom_call.1} parent=1 // pred_region
      %v229 = vld [vmem:[#allocation2] sm:$0xff]
      %v230 = vld [vmem:[%s2] sm:$0x1]
      %v232 = vlaneseq
      %v233 = vshrl.u32 %v232, 7
      %v234 = vsub.s32 0, %v233
      %v235 = vrot.slane %v230, %v234
      %v237 = vadd.f32 %v229, %v235
      %238 = vst [vmem:[#allocation8] sm:$0xff] %v237
    $region29: #{tpu_custom_call.1} parent=1 // pred_fallthru
      _
    // Predicated region
    $region30: #{tpu_custom_call.1} parent=1 // pred_check
      _
    $region31: #{tpu_custom_call.1} parent=1 // pred_check_branch
      %240 = sbr.rel (0) target = $region33
    $region32: #{tpu_custom_call.1} parent=1 // pred_region
      %s242 = ssub.s32 128, 128
      %243 = vsyncadd [#allocation5], %s242
      %s245 = sshll.u32 [#allocation8], 4
      %s246 = int_to_ptr.vmem [resolvable:$true] %s245
      %248 = dma.vmem_to_hbm [thread:$0]  %s246, 128, %s3, [#allocation5]
    $region33: #{tpu_custom_call.1} parent=1 // pred_fallthru
      _
    // Predicated region
    $region34: #{tpu_custom_call.1} parent=1 // pred_check
      _
    $region35: #{tpu_custom_call.1} parent=1 // pred_check_branch
      %250 = sbr.rel (0) target = $region37
    $region36: #{tpu_custom_call.1} parent=1 // pred_region
      %251 = dma.done [#allocation5], 128
    $region37: #{tpu_custom_call.1} parent=1 // pred_fallthru
      _
    %252 = vsyncpa [#allocation4], 1
    %253 = vsyncpa [#allocation7], 1
    %254 = vsyncpa [#allocation5], 1

</llo_original>
